<compile_context>
chip_gen: v5e
topology: v5e:2x2
jax: 0.10.0
libtpu: 0.0.40
codegen_flags: <defaults>
</compile_context>

<pallas_src>
import functools

import jax
import jax.numpy as jnp
from jax.experimental import pallas as pl
from jax.experimental.pallas import tpu as pltpu


def attention_head_kernel(x_ref, wt_ref, wb_ref, vw_ref, vb_ref, o_ref,
                          *, lane_dense_out, matmul_dtype):
    # x_ref:  (Bt, S, H)  features block
    # wt_ref: (H, H)      W.weight pre-transposed to (in, out)
    # wb_ref: (1, H)      W.bias
    # vw_ref: (1, H)      V.weight (out=1, in=H)
    # vb_ref: (1, 1)      V.bias scalar, lives in SMEM
    # o_ref:  (Bt, 1, S*H) if lane_dense_out else (Bt, S, H)
    bt, s, h = x_ref.shape

    # att = tanh(x @ W.T + b); fold (Bt, S) into a single MXU M dimension.
    # (S is the full seq extent and a multiple of 8, so this merge is
    # layout-free.)  x_ref is read here and again at the store — do not keep
    # the full block live across the body (avoids vreg spills at large Bt).
    x2 = x_ref[...].reshape(bt * s, h)                    # (Bt*S, H)
    wt = wt_ref[...]
    if matmul_dtype is not None:
        # TODO(synk): opt-in bf16 MXU path for v6e/v7x when accuracy budget
        # allows; left off by default to stay within the f32 test tolerance.
        x2 = x2.astype(matmul_dtype)
        wt = wt.astype(matmul_dtype)
    att = jnp.tanh(
        jnp.dot(x2, wt, preferred_element_type=jnp.float32)
        + wb_ref[...]                                     # (1, H) broadcast
    )                                                     # (Bt*S, H) f32

    # score = att @ V.T + b, done as broadcast-multiply + lane reduction over
    # H; kept as (Bt, S) (batch on sublanes, seq on lanes).
    score = (
        jnp.sum((att * vw_ref[...]).reshape(bt, s, h), axis=-1)
        + vb_ref[0, 0]
    )                                                     # (Bt, S)

    # softmax over the sequence axis (last axis here == dim=1 of (B, S, 1)).
    score = score - jnp.max(score, axis=-1, keepdims=True)
    e = jnp.exp(score)
    denom = jnp.sum(e, axis=-1, keepdims=True)            # (Bt, 1)
    attn = e * (1.0 / denom)                              # exact divide (tiny)

    # context_vector = attention_weights * features (broadcast over hidden).
    ctx = (attn[:, :, None] * x_ref[...]).astype(o_ref.dtype)   # (Bt, S, H)
    if lane_dense_out:
        # One in-kernel relayout so the store is an unmasked, lane-dense vst.
        o_ref[...] = ctx.reshape(bt, 1, s * h)
    else:
        o_ref[...] = ctx


def _tpu_budget_and_cores():
    """Generation-aware (VMEM budget bytes, #TensorCores sharing the grid)."""
    try:
        info = pltpu.get_tpu_info()
        vmem = int(info.vmem_capacity_bytes)
    except Exception:
        # Unknown device (e.g. interpret mode): conservative budget, single TC.
        return 12 << 20, 1
    if vmem <= (64 << 20):
        # v7x: 64 MiB VMEM per TC, 2 TCs/chip.
        return 24 << 20, 2
    # v5e / v6e: 128 MiB physical VMEM, single TC.
    return 48 << 20, 1


def _choose_block_b(B, S, H, itemsize, vmem_budget_bytes, num_cores):
    """Largest batch tile that (a) divides B, (b) fits the VMEM budget with
    the FULL per-step footprint, and (c) on 2-TC chips (v7x) leaves >= 2 grid
    steps so both TensorCores get work."""
    # Per-batch-row bytes: 2x-buffered input block + 2x-buffered output block
    # (same total bytes whether stored as (S,H) or (1,S*H)), plus the f32 att
    # intermediate and a transient features copy.
    per_batch = 4 * S * H * itemsize + 2 * S * H * 4
    # Fixed bytes: double-buffered (H,H) weight block + small bias blocks.
    fixed = 2 * H * H * itemsize + 4 * H * itemsize + 1024
    cap = max(1, (vmem_budget_bytes - fixed) // per_batch)

    bt = 1
    for d in range(1, B + 1):
        if B % d == 0 and d <= cap:
            bt = d
    # Only v7x (2 TensorCores) benefits from forcing a second "parallel" step;
    # on v5e/v6e it would just double the ~0.35 us/step pipeline overhead.
    if num_cores >= 2 and B >= 2 and B // bt < 2:
        for d in range(B // 2, 0, -1):
            if B % d == 0:
                bt = d
                break
    return bt
    # NOTE: ragged / prime B degrades to bt == 1 (max per-step overhead)
    # rather than padding; acceptable but worth padding B upstream.


def attention_head(features, w_weight, w_bias, v_weight, v_bias,
                   block_b=None, matmul_dtype=None):
    """features: (B, S, H) float32; returns (B, S, H) float32."""
    B, S, H = features.shape
    vmem_budget, num_cores = _tpu_budget_and_cores()
    if block_b is None:
        block_b = _choose_block_b(B, S, H, features.dtype.itemsize,
                                  vmem_budget, num_cores)
    assert B % block_b == 0

    wt = w_weight.T                  # (in, out): transpose hoisted out of kernel
    wb = w_bias.reshape(1, H)
    vw = v_weight.reshape(1, H)
    vb = v_bias.reshape(1, 1)

    # Lane-dense output slab when H is not a multiple of 128 (masked stores
    # otherwise dominate this memory-bound kernel); reshape back in HBM is free.
    lane_dense_out = (H % 128 != 0) and ((S * H) % 128 == 0)
    if lane_dense_out:
        out_shape = jax.ShapeDtypeStruct((B, 1, S * H), features.dtype)
        out_spec = pl.BlockSpec((block_b, 1, S * H), lambda b: (b, 0, 0))
    else:
        out_shape = jax.ShapeDtypeStruct((B, S, H), features.dtype)
        out_spec = pl.BlockSpec((block_b, S, H), lambda b: (b, 0, 0))

    kernel = functools.partial(attention_head_kernel,
                               lane_dense_out=lane_dense_out,
                               matmul_dtype=matmul_dtype)

    out = pl.pallas_call(
        kernel,
        out_shape=out_shape,
        grid_spec=pltpu.PrefetchScalarGridSpec(
            num_scalar_prefetch=0,
            grid=(B // block_b,),
            in_specs=[
                pl.BlockSpec((block_b, S, H), lambda b: (b, 0, 0)),  # features
                pl.BlockSpec((H, H), lambda b: (0, 0)),              # W.weight.T
                pl.BlockSpec((1, H), lambda b: (0, 0)),              # W.bias
                pl.BlockSpec((1, H), lambda b: (0, 0)),              # V.weight
                pl.BlockSpec(memory_space=pltpu.MemorySpace.SMEM),   # V.bias
            ],
            out_specs=out_spec,
        ),
        compiler_params=pltpu.CompilerParams(
            dimension_semantics=("parallel",),
            vmem_limit_bytes=vmem_budget,
        ),
    )(features, wt, wb, vw, vb)

    if lane_dense_out:
        out = out.reshape(B, S, H)
    return out


def attention_head_ref(features, w_weight, w_bias, v_weight, v_bias):
    """Pure-JAX reference matching the PyTorch forward."""
    att = jnp.tanh(jnp.einsum("bsh,oh->bso", features, w_weight) + w_bias)
    score = jnp.einsum("bsh,oh->bso", att, v_weight) + v_bias        # (B, S, 1)
    attn_w = jax.nn.softmax(score, axis=1)
    return attn_w * features


if __name__ == "__main__":
    # small shapes: batch=8, seq=8, hidden=32
    B, S, H = 8, 8, 32

    key = jax.random.PRNGKey(0)
    k_feat, k_ww, k_wb, k_vw, k_vb = jax.random.split(key, 5)

    features = jax.random.normal(k_feat, (B, S, H), dtype=jnp.float32)
    # torch.nn.Linear(H, H): weight (H, H), bias (H,)
    w_weight = jax.random.normal(k_ww, (H, H), dtype=jnp.float32) * 0.1
    w_bias = jax.random.normal(k_wb, (H,), dtype=jnp.float32) * 0.1
    # torch.nn.Linear(H, 1): weight (1, H), bias (1,)
    v_weight = jax.random.normal(k_vw, (1, H), dtype=jnp.float32) * 0.1
    v_bias = jax.random.normal(k_vb, (1,), dtype=jnp.float32) * 0.1

    out = attention_head(features, w_weight, w_bias, v_weight, v_bias)
    out = jax.block_until_ready(out)

    ref = attention_head_ref(features, w_weight, w_bias, v_weight, v_bias)
    assert out.shape == (B, S, H)
    max_err = jnp.max(jnp.abs(out - ref))
    assert jnp.allclose(out, ref, atol=1e-4, rtol=1e-4), f"max abs err {max_err}"

    print("KERNEL_OK")
</pallas_src>

<mosaic_0001>
module attributes {stable_mosaic.version = 11 : i64} {
  func.func @attention_head_kernel(%arg0: i32, %arg1: memref<8x8x32xf32, #tpu.memory_space<vmem>>, %arg2: memref<32x32xf32, #tpu.memory_space<vmem>>, %arg3: memref<1x32xf32, #tpu.memory_space<vmem>>, %arg4: memref<1x32xf32, #tpu.memory_space<vmem>>, %arg5: memref<1x1xf32, #tpu.memory_space<smem>>, %arg6: memref<8x1x256xf32, #tpu.memory_space<vmem>>) attributes {dimension_semantics = [#tpu.dimension_semantics<parallel>], iteration_bounds = array<i64: 1>, scalar_prefetch = 0 : i64, scratch_operands = 0 : i64, tpu.core_type = #tpu.core_type<tc>, window_params = [{transform_indices = @transform_0, window_bounds = array<i64: 8, 8, 32>}, {pipeline_mode = #tpu.pipeline_mode<synchronous>, transform_indices = @transform_1, window_bounds = array<i64: 32, 32>}, {pipeline_mode = #tpu.pipeline_mode<synchronous>, transform_indices = @transform_2, window_bounds = array<i64: 1, 32>}, {pipeline_mode = #tpu.pipeline_mode<synchronous>, transform_indices = @transform_3, window_bounds = array<i64: 1, 32>}, {transform_indices = @transform_4, window_bounds = array<i64: 1, 1>}, {transform_indices = @transform_5, window_bounds = array<i64: 8, 1, 256>}]} {
    %c0 = arith.constant 0 : index
    %c0_0 = arith.constant 0 : index
    %c0_1 = arith.constant 0 : index
    %0 = vector.load %arg1[%c0, %c0_0, %c0_1] : memref<8x8x32xf32, #tpu.memory_space<vmem>>, vector<8x8x32xf32>
    %1 = vector.shape_cast %0 : vector<8x8x32xf32> to vector<64x32xf32>
    %c0_2 = arith.constant 0 : index
    %c0_3 = arith.constant 0 : index
    %2 = vector.load %arg2[%c0_2, %c0_3] : memref<32x32xf32, #tpu.memory_space<vmem>>, vector<32x32xf32>
    %cst = arith.constant dense<0.000000e+00> : vector<64x32xf32>
    %3 = tpu.matmul %1, %2, %cst {dimension_numbers = #tpu.dot_dimension_numbers<[1], [0], [0], [1], [0, 0, 1, 1], [], []>} : vector<64x32xf32>, vector<32x32xf32>, vector<64x32xf32> -> vector<64x32xf32>
    %c0_4 = arith.constant 0 : index
    %c0_5 = arith.constant 0 : index
    %4 = vector.load %arg3[%c0_4, %c0_5] : memref<1x32xf32, #tpu.memory_space<vmem>>, vector<1x32xf32>
    %5 = vector.broadcast %4 : vector<1x32xf32> to vector<64x32xf32>
    %6 = arith.addf %3, %5 : vector<64x32xf32>
    %7 = math.tanh %6 : vector<64x32xf32>
    %c0_6 = arith.constant 0 : index
    %c0_7 = arith.constant 0 : index
    %8 = vector.load %arg4[%c0_6, %c0_7] : memref<1x32xf32, #tpu.memory_space<vmem>>, vector<1x32xf32>
    %9 = vector.broadcast %8 : vector<1x32xf32> to vector<64x32xf32>
    %10 = arith.mulf %7, %9 : vector<64x32xf32>
    %11 = vector.shape_cast %10 : vector<64x32xf32> to vector<8x8x32xf32>
    %cst_8 = arith.constant dense<0.000000e+00> : vector<8x8xf32>
    %12 = vector.multi_reduction <add>, %11, %cst_8 [2] : vector<8x8x32xf32> to vector<8x8xf32>
    %c0_9 = arith.constant 0 : index
    %c0_10 = arith.constant 0 : index
    %13 = memref.load %arg5[%c0_9, %c0_10] : memref<1x1xf32, #tpu.memory_space<smem>>
    %14 = vector.broadcast %13 : f32 to vector<8x8xf32>
    %15 = arith.addf %12, %14 : vector<8x8xf32>
    %cst_11 = arith.constant dense<0xFF800000> : vector<8xf32>
    %16 = vector.multi_reduction <maximumf>, %15, %cst_11 [1] : vector<8x8xf32> to vector<8xf32>
    %17 = vector.shape_cast %16 : vector<8xf32> to vector<8x1xf32>
    %18 = vector.broadcast %17 : vector<8x1xf32> to vector<8x8xf32>
    %19 = arith.subf %15, %18 : vector<8x8xf32>
    %20 = math.exp %19 : vector<8x8xf32>
    %cst_12 = arith.constant dense<0.000000e+00> : vector<8xf32>
    %21 = vector.multi_reduction <add>, %20, %cst_12 [1] : vector<8x8xf32> to vector<8xf32>
    %22 = vector.shape_cast %21 : vector<8xf32> to vector<8x1xf32>
    %cst_13 = arith.constant 1.000000e+00 : f32
    %23 = vector.broadcast %cst_13 : f32 to vector<8x1xf32>
    %24 = arith.divf %23, %22 : vector<8x1xf32>
    %25 = vector.broadcast %24 : vector<8x1xf32> to vector<8x8xf32>
    %26 = arith.mulf %20, %25 : vector<8x8xf32>
    %27 = vector.shape_cast %26 : vector<8x8xf32> to vector<8x8x1xf32>
    %c0_14 = arith.constant 0 : index
    %c0_15 = arith.constant 0 : index
    %c0_16 = arith.constant 0 : index
    %28 = vector.load %arg1[%c0_14, %c0_15, %c0_16] : memref<8x8x32xf32, #tpu.memory_space<vmem>>, vector<8x8x32xf32>
    %29 = vector.broadcast %27 : vector<8x8x1xf32> to vector<8x8x32xf32>
    %30 = arith.mulf %29, %28 : vector<8x8x32xf32>
    %31 = vector.shape_cast %30 : vector<8x8x32xf32> to vector<8x1x256xf32>
    %c0_17 = arith.constant 0 : index
    %c0_18 = arith.constant 0 : index
    %c0_19 = arith.constant 0 : index
    %32 = vector.load %arg6[%c0_17, %c0_18, %c0_19] : memref<8x1x256xf32, #tpu.memory_space<vmem>>, vector<8x1x256xf32>
    tpu.vector_store %arg6[%c0_17, %c0_18, %c0_19], %31 {strides = array<i32>} : memref<8x1x256xf32, #tpu.memory_space<vmem>>, vector<8x1x256xf32>,
    return
  }
  func.func @transform_0(%arg0: i32) -> (i32, i32, i32) {
    %c0_i32 = arith.constant 0 : i32
    %c0_i32_0 = arith.constant 0 : i32
    %c0_i32_1 = arith.constant 0 : i32
    return %arg0, %c0_i32, %c0_i32_0 : i32, i32, i32
  }
  func.func @transform_1(%arg0: i32) -> (i32, i32) {
    %c0_i32 = arith.constant 0 : i32
    %c0_i32_0 = arith.constant 0 : i32
    %c0_i32_1 = arith.constant 0 : i32
    return %c0_i32, %c0_i32_0 : i32, i32
  }
  func.func @transform_2(%arg0: i32) -> (i32, i32) {
    %c0_i32 = arith.constant 0 : i32
    %c0_i32_0 = arith.constant 0 : i32
    %c0_i32_1 = arith.constant 0 : i32
    return %c0_i32, %c0_i32_0 : i32, i32
  }
  func.func @transform_3(%arg0: i32) -> (i32, i32) {
    %c0_i32 = arith.constant 0 : i32
    %c0_i32_0 = arith.constant 0 : i32
    %c0_i32_1 = arith.constant 0 : i32
    return %c0_i32, %c0_i32_0 : i32, i32
  }
  func.func @transform_4(%arg0: i32) -> (i32, i32) {
    %c0_i32 = arith.constant 0 : i32
    %c0_i32_0 = arith.constant 0 : i32
    %c0_i32_1 = arith.constant 0 : i32
    return %c0_i32, %c0_i32_0 : i32, i32
  }
  func.func @transform_5(%arg0: i32) -> (i32, i32, i32) {
    %c0_i32 = arith.constant 0 : i32
    %c0_i32_0 = arith.constant 0 : i32
    %c0_i32_1 = arith.constant 0 : i32
    return %arg0, %c0_i32, %c0_i32_0 : i32, i32, i32
  }
}

</mosaic_0001>

<llo_original>
// kernel: tpu_custom_call.1
$region0: #{tpu_custom_call.1}
  #allocation0 [shape = 'u32[]', space=smem, size = 0x4, offset = 0x4, fixed_abs, tag = 'smem constant byte address 0x4 - core index']
  #allocation1 [shape = 'u32[72,128]{1,0:T(1,128)}', space=vmem, size = 0x9000, scoped, tag = 'internal scratch']
  #allocation2 [shape = 'f32[1,1]{1,0:T(1,128)S(6)}', space=smem, size = 0x200, scoped, tag = 'scoped memory for tpu_custom_call.1']
  %s0 = inlined_call_operand.hbm [shape: f32[8,8,32], index: 0, kind: input, shape index: {}]
  %s1 = inlined_call_operand.hbm [shape: f32[32,32], index: 1, kind: input, shape index: {}]
  %s2 = inlined_call_operand.vmem [shape: f32[1,32], index: 2, kind: input, shape index: {}]
  %s3 = inlined_call_operand.vmem [shape: f32[1,32], index: 3, kind: input, shape index: {}]
  %s4 = inlined_call_operand.<no memory space> [shape: f32[1,1], index: 4, kind: input, shape index: {}]
  %s5 = inlined_call_operand.hbm [shape: f32[8,1,256], index: 5, kind: output, shape index: {}]
  %s6 = sld [smem:[#allocation0]]
  $region38: #{tpu_custom_call.1} parent=0
    _
  %s8 = ssub.s32 1, %s6
  %s9 = scalar_select 0, %s8, %s6
  %10 = sst [smem:[#allocation2]] %s4
  $region1: #{tpu_custom_call.1} parent=0
    #allocation3 [shape = 'u8[32768]{0}', space=vmem, size = 0x8000, scoped, tag = 'input window, operand 0, single buffered']
    #allocation4 [shape = 's32[1]{0}', space=sflag, size = 0x4, scoped, tag = 'scoped memory for tpu_custom_call.1']
    #allocation5 [shape = 's32[1]{0}', space=sflag, size = 0x4, scoped, tag = 'scoped memory for tpu_custom_call.1']
    #allocation6 [shape = 'u8[16384]{0}', space=vmem, size = 0x4000, scoped, tag = 'input window, operand 1, single buffered']
    #allocation7 [shape = 's32[1]{0}', space=sflag, size = 0x4, scoped, tag = 'scoped memory for tpu_custom_call.1']
    #allocation8 [shape = 'u8[8192]{0}', space=vmem, size = 0x2000, scoped, tag = 'output window, operand 0, single buffered']
    %11 = vsyncpa [#allocation4], 0
    %12 = vsyncpa [#allocation7], 0
    %13 = vsyncpa [#allocation5], 0
    // Predicated region
    $region2: #{tpu_custom_call.1} parent=1 // pred_check
      _
    $region3: #{tpu_custom_call.1} parent=1 // pred_check_branch
      %15 = sbr.rel (0) target = $region5
    $region4: #{tpu_custom_call.1} parent=1 // pred_region
      %17 = vsyncadd [#allocation4], 0
      %s18 = sshll.u32 %s0, 4
      %s19 = int_to_ptr.hbm [resolvable:$true] %s18
      %s20 = sshll.u32 [#allocation3], 4
      %s21 = int_to_ptr.vmem [resolvable:$true] %s20
      %26 = dma.hbm_to_vmem [thread:$0]  %s19, 1024, %s21, [#allocation4], 128, 128, 8
    $region5: #{tpu_custom_call.1} parent=1 // pred_fallthru
      _
    // Predicated region
    $region6: #{tpu_custom_call.1} parent=1 // pred_check
      _
    $region7: #{tpu_custom_call.1} parent=1 // pred_check_branch
      %28 = sbr.rel (0) target = $region9
    $region8: #{tpu_custom_call.1} parent=1 // pred_region
      %30 = vsyncadd [#allocation7], 0
      %s31 = sshll.u32 %s1, 4
      %s32 = int_to_ptr.hbm [resolvable:$true] %s31
      %s33 = sshll.u32 [#allocation6], 4
      %s34 = int_to_ptr.vmem [resolvable:$true] %s33
      %39 = dma.hbm_to_vmem [thread:$0]  %s32, 512, %s34, [#allocation7], 128, 128, 8
    $region9: #{tpu_custom_call.1} parent=1 // pred_fallthru
      _
    // Predicated region
    $region10: #{tpu_custom_call.1} parent=1 // pred_check
      _
    $region11: #{tpu_custom_call.1} parent=1 // pred_check_branch
      %41 = sbr.rel (0) target = $region13
    $region12: #{tpu_custom_call.1} parent=1 // pred_region
      _
    $region13: #{tpu_custom_call.1} parent=1 // pred_fallthru
      _
    // Predicated region
    $region14: #{tpu_custom_call.1} parent=1 // pred_check
      _
    $region15: #{tpu_custom_call.1} parent=1 // pred_check_branch
      %43 = sbr.rel (0) target = $region17
    $region16: #{tpu_custom_call.1} parent=1 // pred_region
      _
    $region17: #{tpu_custom_call.1} parent=1 // pred_fallthru
      _
    // Predicated region
    $region18: #{tpu_custom_call.1} parent=1 // pred_check
      _
    $region19: #{tpu_custom_call.1} parent=1 // pred_check_branch
      %45 = sbr.rel (0) target = $region21
    $region20: #{tpu_custom_call.1} parent=1 // pred_region
      _
    $region21: #{tpu_custom_call.1} parent=1 // pred_fallthru
      _
    // Predicated region
    $region22: #{tpu_custom_call.1} parent=1 // pred_check
      _
    $region23: #{tpu_custom_call.1} parent=1 // pred_check_branch
      %47 = sbr.rel (0) target = $region25
    $region24: #{tpu_custom_call.1} parent=1 // pred_region
      %49 = dma.done [#allocation4], 1024
    $region25: #{tpu_custom_call.1} parent=1 // pred_fallthru
      _
    // Predicated region
    $region26: #{tpu_custom_call.1} parent=1 // pred_check
      _
    $region27: #{tpu_custom_call.1} parent=1 // pred_check_branch
      %51 = sbr.rel (0) target = $region29
    $region28: #{tpu_custom_call.1} parent=1 // pred_region
      %53 = dma.done [#allocation7], 512
    $region29: #{tpu_custom_call.1} parent=1 // pred_fallthru
      _
    %v54 = vld [vmem:[#allocation3] sm:$0xff]
    %v55 = vld [vmem:[#allocation3 + $0x8] sm:$0xff]
    %v56 = vld [vmem:[#allocation3 + $0x10] sm:$0xff]
    %v57 = vld [vmem:[#allocation3 + $0x18] sm:$0xff]
    %v58 = vld [vmem:[#allocation3 + $0x20] sm:$0xff]
    %v59 = vld [vmem:[#allocation3 + $0x28] sm:$0xff]
    %v60 = vld [vmem:[#allocation3 + $0x30] sm:$0xff]
    %v61 = vld [vmem:[#allocation3 + $0x38] sm:$0xff]
    %v62 = vld [vmem:[#allocation6] sm:$0xff]
    %v63 = vld [vmem:[#allocation6 + $0x8] sm:$0xff]
    %v64 = vld [vmem:[#allocation6 + $0x10] sm:$0xff]
    %v65 = vld [vmem:[#allocation6 + $0x18] sm:$0xff]
    %v66 = vld [vmem:[%s2] sm:$0x1]
    %v68 = vperm.slane %v66, 0
    %vm70 = vcmask 261120
    %v72 = vsel %vm70, %v54, 0
    %v75 = vsel %vm70, %v55, 0
    %v78 = vsel %vm70, %v56, 0
    %v81 = vsel %vm70, %v57, 0
    %v84 = vsel %vm70, %v58, 0
    %v87 = vsel %vm70, %v59, 0
    %v90 = vsel %vm70, %v60, 0
    %v93 = vsel %vm70, %v61, 0
    %95 = vmatpush.msra.mxu0 0.0
    %96 = vmatpush.msra.mxu0 0.0
    %97 = vmatpush.msra.mxu0 0.0
    %98 = vmatpush.msra.mxu0 0.0
    %99 = vmatpush.msra.mxu0 0.0
    %100 = vmatpush.msra.mxu0 0.0
    %101 = vmatpush.msra.mxu0 0.0
    %102 = vmatpush.msra.mxu0 0.0
    %103 = vmatpush.msra.mxu0 0.0
    %104 = vmatpush.msra.mxu0 0.0
    %105 = vmatpush.msra.mxu0 0.0
    %106 = vmatpush.msra.mxu0 0.0
    %107 = vmatpush.msra.mxu0 %v65
    %108 = vmatpush.msra.mxu0 %v64
    %109 = vmatpush.msra.mxu0 %v63
    %110 = vmatpush.msra.mxu0 %v62
    %111 = vmatmul.f32.gmra.mxu0 %v72
    %v112 = vpop.f32.mrf.mxu0
    %v113 = vadd.f32 %v68, %v112
    %114 = vmatmul.f32.gmra.mxu0 %v75
    %v115 = vpop.f32.mrf.mxu0
    %v116 = vadd.f32 %v68, %v115
    %117 = vmatmul.f32.gmra.mxu0 %v78
    %v118 = vpop.f32.mrf.mxu0
    %v119 = vadd.f32 %v68, %v118
    %120 = vmatmul.f32.gmra.mxu0 %v81
    %v121 = vpop.f32.mrf.mxu0
    %v122 = vadd.f32 %v68, %v121
    %123 = vmatmul.f32.gmra.mxu0 %v84
    %v124 = vpop.f32.mrf.mxu0
    %v125 = vadd.f32 %v68, %v124
    %126 = vmatmul.f32.gmra.mxu0 %v87
    %v127 = vpop.f32.mrf.mxu0
    %v128 = vadd.f32 %v68, %v127
    %129 = vmatmul.f32.gmra.mxu0 %v90
    %v130 = vpop.f32.mrf.mxu0
    %v131 = vadd.f32 %v68, %v130
    %132 = vmatmul.f32.gmra.mxu0 %v93
    %v133 = vpop.f32.mrf.mxu0
    %v134 = vadd.f32 %v68, %v133
    %135 = vdwg.mxu0
    %v136 = vtanh.pop %v113
    %v137 = vtanh.pop %v116
    %v138 = vtanh.pop %v119
    %v139 = vtanh.pop %v122
    %v140 = vtanh.pop %v125
    %v141 = vtanh.pop %v128
    %v142 = vtanh.pop %v131
    %v143 = vtanh.pop %v134
    %v144 = vld [vmem:[%s3] sm:$0x1]
    %v146 = vperm.slane %v144, 0
    %v148 = vmul.f32 %v136, %v146
    %v149 = vmul.f32 %v137, %v146
    %v150 = vmul.f32 %v138, %v146
    %v151 = vmul.f32 %v139, %v146
    %v152 = vmul.f32 %v140, %v146
    %v153 = vmul.f32 %v141, %v146
    %v154 = vmul.f32 %v142, %v146
    %v155 = vmul.f32 %v143, %v146
    %v156 = vsel %vm70, %v148, 0.0
    %157 = vadd.xlane.f32.xlu0 %v156
    %v158 = vpop.xlane.xlu0 %157
    %v159 = vsel %vm70, %v149, 0.0
    %160 = vadd.xlane.f32.xlu0 %v159
    %v161 = vpop.xlane.xlu0 %160
    %v162 = vsel %vm70, %v150, 0.0
    %163 = vadd.xlane.f32.xlu0 %v162
    %v164 = vpop.xlane.xlu0 %163
    %v165 = vsel %vm70, %v151, 0.0
    %166 = vadd.xlane.f32.xlu0 %v165
    %v167 = vpop.xlane.xlu0 %166
    %v168 = vsel %vm70, %v152, 0.0
    %169 = vadd.xlane.f32.xlu0 %v168
    %v170 = vpop.xlane.xlu0 %169
    %v171 = vsel %vm70, %v153, 0.0
    %172 = vadd.xlane.f32.xlu0 %v171
    %v173 = vpop.xlane.xlu0 %172
    %v174 = vsel %vm70, %v154, 0.0
    %175 = vadd.xlane.f32.xlu0 %v174
    %v176 = vpop.xlane.xlu0 %175
    %v177 = vsel %vm70, %v155, 0.0
    %178 = vadd.xlane.f32.xlu0 %v177
    %v179 = vpop.xlane.xlu0 %178
    %s180 = sld [smem:[#allocation2]]
    %v181 = vstv %s180
    %v182 = vadd.f32 %v158, %v181
    %v183 = vadd.f32 %v161, %v181
    %v184 = vadd.f32 %v164, %v181
    %v185 = vadd.f32 %v167, %v181
    %v186 = vadd.f32 %v170, %v181
    %v187 = vadd.f32 %v173, %v181
    %v188 = vadd.f32 %v176, %v181
    %v189 = vadd.f32 %v179, %v181
    %v198 = vlaneseq
    %v199 = vand.u32 %v198, 127
    %v200 = vperm.slane %v182, %v199
    %v201 = vperm.slane %v183, %v199
    %v202 = vperm.slane %v184, %v199
    %v203 = vperm.slane %v185, %v199
    %v204 = vperm.slane %v186, %v199
    %v205 = vperm.slane %v187, %v199
    %v206 = vperm.slane %v188, %v199
    %v207 = vperm.slane %v189, %v199
    %vm208 = vcmask 1041409
    %v209 = vsel %vm208, %v201, %v200
    %vm210 = vcmask 1042434
    %v211 = vsel %vm210, %v202, %v209
    %vm212 = vcmask 1043459
    %v213 = vsel %vm212, %v203, %v211
    %vm214 = vcmask 1044484
    %v215 = vsel %vm214, %v204, %v213
    %vm216 = vcmask 1045509
    %v217 = vsel %vm216, %v205, %v215
    %vm218 = vcmask 1046534
    %v219 = vsel %vm218, %v206, %v217
    %vm220 = vcmask 1047559
    %v221 = vsel %vm220, %v207, %v219
    %vm223 = vcmask 64512
    %v224 = vsel %vm223, %v221, -inf
    %225 = vmax.xlane.f32.xlu0 %v224
    %v226 = vpop.xlane.xlu0 %225
    %v228 = vperm.slane %v226, 0
    %v229 = vperm.slane %v226, 1
    %v230 = vperm.slane %v226, 2
    %v231 = vperm.slane %v226, 3
    %v232 = vperm.slane %v226, 4
    %v233 = vperm.slane %v226, 5
    %v234 = vperm.slane %v226, 6
    %v235 = vperm.slane %v226, 7
    %v244 = vsub.f32 %v182, %v228
    %v245 = vsub.f32 %v183, %v229
    %v246 = vsub.f32 %v184, %v230
    %v247 = vsub.f32 %v185, %v231
    %v248 = vsub.f32 %v186, %v232
    %v249 = vsub.f32 %v187, %v233
    %v250 = vsub.f32 %v188, %v234
    %v251 = vsub.f32 %v189, %v235
    %v252 = vmul.f32 %v244, 1.442695
    %v253 = vpow.pop %v252
    %v254 = vmul.f32 %v245, 1.442695
    %v255 = vpow.pop %v254
    %v256 = vmul.f32 %v246, 1.442695
    %v257 = vpow.pop %v256
    %v258 = vmul.f32 %v247, 1.442695
    %v259 = vpow.pop %v258
    %v260 = vmul.f32 %v248, 1.442695
    %v261 = vpow.pop %v260
    %v262 = vmul.f32 %v249, 1.442695
    %v263 = vpow.pop %v262
    %v264 = vmul.f32 %v250, 1.442695
    %v265 = vpow.pop %v264
    %v266 = vmul.f32 %v251, 1.442695
    %v267 = vpow.pop %v266
    %276 = vset.pattern.permute.xlu0 0
    %277 = vperm.xlu0 %276, %v253
    %v278 = vpop.permute.xlu0 %277
    %279 = vset.pattern.permute.xlu0 0
    %280 = vperm.xlu0 %279, %v255
    %v281 = vpop.permute.xlu0 %280
    %282 = vset.pattern.permute.xlu0 0
    %283 = vperm.xlu0 %282, %v257
    %v284 = vpop.permute.xlu0 %283
    %285 = vset.pattern.permute.xlu0 0
    %286 = vperm.xlu0 %285, %v259
    %v287 = vpop.permute.xlu0 %286
    %288 = vset.pattern.permute.xlu0 0
    %289 = vperm.xlu0 %288, %v261
    %v290 = vpop.permute.xlu0 %289
    %291 = vset.pattern.permute.xlu0 0
    %292 = vperm.xlu0 %291, %v263
    %v293 = vpop.permute.xlu0 %292
    %294 = vset.pattern.permute.xlu0 0
    %295 = vperm.xlu0 %294, %v265
    %v296 = vpop.permute.xlu0 %295
    %297 = vset.pattern.permute.xlu0 0
    %298 = vperm.xlu0 %297, %v267
    %v299 = vpop.permute.xlu0 %298
    %v300 = vperm.slane %v278, %v199
    %v301 = vperm.slane %v281, %v199
    %v302 = vperm.slane %v284, %v199
    %v303 = vperm.slane %v287, %v199
    %v304 = vperm.slane %v290, %v199
    %v305 = vperm.slane %v293, %v199
    %v306 = vperm.slane %v296, %v199
    %v307 = vperm.slane %v299, %v199
    %v308 = vsel %vm208, %v301, %v300
    %v309 = vsel %vm210, %v302, %v308
    %v310 = vsel %vm212, %v303, %v309
    %v311 = vsel %vm214, %v304, %v310
    %v312 = vsel %vm216, %v305, %v311
    %v313 = vsel %vm218, %v306, %v312
    %v314 = vsel %vm220, %v307, %v313
    %v316 = vsel %vm223, %v314, 0.0
    %317 = vadd.xlane.f32.xlu0 %v316
    %v318 = vpop.xlane.xlu0 %317
    %v319 = vrcp.pop %v318
    %v320 = vmul.f32 %v318, %v319
    %v321 = vsub.f32 1.0, %v320
    %v322 = vmul.f32 %v319, %v321
    %v323 = vadd.f32 %v319, %v322
    %vm324 = vweird.f32 %v318
    %vm325 = vweird.f32 %v319
    %vm326 = vmor %vm324, %vm325
    %v327 = vsel %vm326, %v319, %v323
    %v328 = vand.u32 2147483647, %v318
    %vm329 = vcmp.eq.f32.partialorder %v328, 8.507059e+37
    %v330 = vand.u32 %v318, 2147483648
    %v331 = vor.u32 1.1754944e-38, %v330
    %v332 = vsel %vm329, %v331, %v327
    %v333 = vmul.f32 1.0, %v332
    %v335 = vperm.slane %v333, 0
    %v336 = vperm.slane %v333, 1
    %v337 = vperm.slane %v333, 2
    %v338 = vperm.slane %v333, 3
    %v339 = vperm.slane %v333, 4
    %v340 = vperm.slane %v333, 5
    %v341 = vperm.slane %v333, 6
    %v342 = vperm.slane %v333, 7
    %v351 = vmul.f32 %v253, %v335
    %v352 = vmul.f32 %v255, %v336
    %v353 = vmul.f32 %v257, %v337
    %v354 = vmul.f32 %v259, %v338
    %v355 = vmul.f32 %v261, %v339
    %v356 = vmul.f32 %v263, %v340
    %v357 = vmul.f32 %v265, %v341
    %v358 = vmul.f32 %v267, %v342
    %360 = vset.pattern.permute.xlu0 0
    %361 = vperm.xlu0 %360, %v351
    %v362 = vpop.permute.xlu0 %361
    %365 = vset.pattern.permute.xlu0 0
    %366 = vperm.xlu0 %365, %v352
    %v367 = vpop.permute.xlu0 %366
    %370 = vset.pattern.permute.xlu0 0
    %371 = vperm.xlu0 %370, %v353
    %v372 = vpop.permute.xlu0 %371
    %375 = vset.pattern.permute.xlu0 0
    %376 = vperm.xlu0 %375, %v354
    %v377 = vpop.permute.xlu0 %376
    %380 = vset.pattern.permute.xlu0 0
    %381 = vperm.xlu0 %380, %v355
    %v382 = vpop.permute.xlu0 %381
    %385 = vset.pattern.permute.xlu0 0
    %386 = vperm.xlu0 %385, %v356
    %v387 = vpop.permute.xlu0 %386
    %390 = vset.pattern.permute.xlu0 0
    %391 = vperm.xlu0 %390, %v357
    %v392 = vpop.permute.xlu0 %391
    %395 = vset.pattern.permute.xlu0 0
    %396 = vperm.xlu0 %395, %v358
    %v397 = vpop.permute.xlu0 %396
    %v399 = vmul.f32 %v362, %v54
    %v400 = vmul.f32 %v367, %v55
    %v401 = vmul.f32 %v372, %v56
    %v402 = vmul.f32 %v377, %v57
    %v403 = vmul.f32 %v382, %v58
    %v404 = vmul.f32 %v387, %v59
    %v405 = vmul.f32 %v392, %v60
    %v406 = vmul.f32 %v397, %v61
    %v407 = vrot.slane %v399, 4
    %vm408 = vcmask 1047556
    %v409 = vsel %vm408, 0.0, %v407
    %v411 = vunpack.c.l.s4 1983009808
    %v412 = vunpack.c.0.s8 %v411
    %v413 = vperm.slane %v399, %v412
    %v415 = vunpack.c.l.s4 1983009808
    %v416 = vunpack.c.0.s8 %v415
    %v417 = vperm.slane %v409, %v416
    %v418 = vrot.slane %v413, 4
    %v419 = vsel %vm408, 0.0, %v418
    %v421 = vunpack.c.l.s4 1934713408
    %v422 = vunpack.c.0.s8 %v421
    %v423 = vperm.slane %v413, %v422
    %v425 = vunpack.c.l.s4 1934713408
    %v426 = vunpack.c.0.s8 %v425
    %v427 = vperm.slane %v419, %v426
    %v428 = vrot.slane %v417, 4
    %v429 = vsel %vm408, 0.0, %v428
    %v431 = vunpack.c.l.s4 1934713408
    %v432 = vunpack.c.0.s8 %v431
    %v433 = vperm.slane %v417, %v432
    %v435 = vunpack.c.l.s4 1934713408
    %v436 = vunpack.c.0.s8 %v435
    %v437 = vperm.slane %v429, %v436
    %v438 = vrot.slane %v423, 4
    %v439 = vsel %vm408, 0.0, %v438
    %v440 = vrot.slane %v427, 4
    %v441 = vsel %vm408, 0.0, %v440
    %v442 = vrot.slane %v433, 4
    %v443 = vsel %vm408, 0.0, %v442
    %v444 = vrot.slane %v437, 4
    %v445 = vsel %vm408, 0.0, %v444
    %v446 = vrot.slane %v400, 4
    %v447 = vsel %vm408, 0.0, %v446
    %v449 = vunpack.c.l.s4 1983009808
    %v450 = vunpack.c.0.s8 %v449
    %v451 = vperm.slane %v400, %v450
    %v453 = vunpack.c.l.s4 1983009808
    %v454 = vunpack.c.0.s8 %v453
    %v455 = vperm.slane %v447, %v454
    %v456 = vrot.slane %v451, 4
    %v457 = vsel %vm408, 0.0, %v456
    %v459 = vunpack.c.l.s4 1934713408
    %v460 = vunpack.c.0.s8 %v459
    %v461 = vperm.slane %v451, %v460
    %v463 = vunpack.c.l.s4 1934713408
    %v464 = vunpack.c.0.s8 %v463
    %v465 = vperm.slane %v457, %v464
    %v466 = vrot.slane %v455, 4
    %v467 = vsel %vm408, 0.0, %v466
    %v469 = vunpack.c.l.s4 1934713408
    %v470 = vunpack.c.0.s8 %v469
    %v471 = vperm.slane %v455, %v470
    %v473 = vunpack.c.l.s4 1934713408
    %v474 = vunpack.c.0.s8 %v473
    %v475 = vperm.slane %v467, %v474
    %v476 = vrot.slane %v461, 4
    %v477 = vsel %vm408, 0.0, %v476
    %v478 = vrot.slane %v465, 4
    %v479 = vsel %vm408, 0.0, %v478
    %v480 = vrot.slane %v471, 4
    %v481 = vsel %vm408, 0.0, %v480
    %v482 = vrot.slane %v475, 4
    %v483 = vsel %vm408, 0.0, %v482
    %v484 = vrot.slane %v401, 4
    %v485 = vsel %vm408, 0.0, %v484
    %v487 = vunpack.c.l.s4 1983009808
    %v488 = vunpack.c.0.s8 %v487
    %v489 = vperm.slane %v401, %v488
    %v491 = vunpack.c.l.s4 1983009808
    %v492 = vunpack.c.0.s8 %v491
    %v493 = vperm.slane %v485, %v492
    %v494 = vrot.slane %v489, 4
    %v495 = vsel %vm408, 0.0, %v494
    %v497 = vunpack.c.l.s4 1934713408
    %v498 = vunpack.c.0.s8 %v497
    %v499 = vperm.slane %v489, %v498
    %v501 = vunpack.c.l.s4 1934713408
    %v502 = vunpack.c.0.s8 %v501
    %v503 = vperm.slane %v495, %v502
    %v504 = vrot.slane %v493, 4
    %v505 = vsel %vm408, 0.0, %v504
    %v507 = vunpack.c.l.s4 1934713408
    %v508 = vunpack.c.0.s8 %v507
    %v509 = vperm.slane %v493, %v508
    %v511 = vunpack.c.l.s4 1934713408
    %v512 = vunpack.c.0.s8 %v511
    %v513 = vperm.slane %v505, %v512
    %v514 = vrot.slane %v499, 4
    %v515 = vsel %vm408, 0.0, %v514
    %v516 = vrot.slane %v503, 4
    %v517 = vsel %vm408, 0.0, %v516
    %v518 = vrot.slane %v509, 4
    %v519 = vsel %vm408, 0.0, %v518
    %v520 = vrot.slane %v513, 4
    %v521 = vsel %vm408, 0.0, %v520
    %v522 = vrot.slane %v402, 4
    %v523 = vsel %vm408, 0.0, %v522
    %v525 = vunpack.c.l.s4 1983009808
    %v526 = vunpack.c.0.s8 %v525
    %v527 = vperm.slane %v402, %v526
    %v529 = vunpack.c.l.s4 1983009808
    %v530 = vunpack.c.0.s8 %v529
    %v531 = vperm.slane %v523, %v530
    %v532 = vrot.slane %v527, 4
    %v533 = vsel %vm408, 0.0, %v532
    %v535 = vunpack.c.l.s4 1934713408
    %v536 = vunpack.c.0.s8 %v535
    %v537 = vperm.slane %v527, %v536
    %v539 = vunpack.c.l.s4 1934713408
    %v540 = vunpack.c.0.s8 %v539
    %v541 = vperm.slane %v533, %v540
    %v542 = vrot.slane %v531, 4
    %v543 = vsel %vm408, 0.0, %v542
    %v545 = vunpack.c.l.s4 1934713408
    %v546 = vunpack.c.0.s8 %v545
    %v547 = vperm.slane %v531, %v546
    %v549 = vunpack.c.l.s4 1934713408
    %v550 = vunpack.c.0.s8 %v549
    %v551 = vperm.slane %v543, %v550
    %v552 = vrot.slane %v537, 4
    %v553 = vsel %vm408, 0.0, %v552
    %v554 = vrot.slane %v541, 4
    %v555 = vsel %vm408, 0.0, %v554
    %v556 = vrot.slane %v547, 4
    %v557 = vsel %vm408, 0.0, %v556
    %v558 = vrot.slane %v551, 4
    %v559 = vsel %vm408, 0.0, %v558
    %v560 = vrot.slane %v403, 4
    %v561 = vsel %vm408, 0.0, %v560
    %v563 = vunpack.c.l.s4 1983009808
    %v564 = vunpack.c.0.s8 %v563
    %v565 = vperm.slane %v403, %v564
    %v567 = vunpack.c.l.s4 1983009808
    %v568 = vunpack.c.0.s8 %v567
    %v569 = vperm.slane %v561, %v568
    %v570 = vrot.slane %v565, 4
    %v571 = vsel %vm408, 0.0, %v570
    %v573 = vunpack.c.l.s4 1934713408
    %v574 = vunpack.c.0.s8 %v573
    %v575 = vperm.slane %v565, %v574
    %v577 = vunpack.c.l.s4 1934713408
    %v578 = vunpack.c.0.s8 %v577
    %v579 = vperm.slane %v571, %v578
    %v580 = vrot.slane %v569, 4
    %v581 = vsel %vm408, 0.0, %v580
    %v583 = vunpack.c.l.s4 1934713408
    %v584 = vunpack.c.0.s8 %v583
    %v585 = vperm.slane %v569, %v584
    %v587 = vunpack.c.l.s4 1934713408
    %v588 = vunpack.c.0.s8 %v587
    %v589 = vperm.slane %v581, %v588
    %v590 = vrot.slane %v575, 4
    %v591 = vsel %vm408, 0.0, %v590
    %v592 = vrot.slane %v579, 4
    %v593 = vsel %vm408, 0.0, %v592
    %v594 = vrot.slane %v585, 4
    %v595 = vsel %vm408, 0.0, %v594
    %v596 = vrot.slane %v589, 4
    %v597 = vsel %vm408, 0.0, %v596
    %v598 = vrot.slane %v404, 4
    %v599 = vsel %vm408, 0.0, %v598
    %v601 = vunpack.c.l.s4 1983009808
    %v602 = vunpack.c.0.s8 %v601
    %v603 = vperm.slane %v404, %v602
    %v605 = vunpack.c.l.s4 1983009808
    %v606 = vunpack.c.0.s8 %v605
    %v607 = vperm.slane %v599, %v606
    %v608 = vrot.slane %v603, 4
    %v609 = vsel %vm408, 0.0, %v608
    %v611 = vunpack.c.l.s4 1934713408
    %v612 = vunpack.c.0.s8 %v611
    %v613 = vperm.slane %v603, %v612
    %v615 = vunpack.c.l.s4 1934713408
    %v616 = vunpack.c.0.s8 %v615
    %v617 = vperm.slane %v609, %v616
    %v618 = vrot.slane %v607, 4
    %v619 = vsel %vm408, 0.0, %v618
    %v621 = vunpack.c.l.s4 1934713408
    %v622 = vunpack.c.0.s8 %v621
    %v623 = vperm.slane %v607, %v622
    %v625 = vunpack.c.l.s4 1934713408
    %v626 = vunpack.c.0.s8 %v625
    %v627 = vperm.slane %v619, %v626
    %v628 = vrot.slane %v613, 4
    %v629 = vsel %vm408, 0.0, %v628
    %v630 = vrot.slane %v617, 4
    %v631 = vsel %vm408, 0.0, %v630
    %v632 = vrot.slane %v623, 4
    %v633 = vsel %vm408, 0.0, %v632
    %v634 = vrot.slane %v627, 4
    %v635 = vsel %vm408, 0.0, %v634
    %v636 = vrot.slane %v405, 4
    %v637 = vsel %vm408, 0.0, %v636
    %v639 = vunpack.c.l.s4 1983009808
    %v640 = vunpack.c.0.s8 %v639
    %v641 = vperm.slane %v405, %v640
    %v643 = vunpack.c.l.s4 1983009808
    %v644 = vunpack.c.0.s8 %v643
    %v645 = vperm.slane %v637, %v644
    %v646 = vrot.slane %v641, 4
    %v647 = vsel %vm408, 0.0, %v646
    %v649 = vunpack.c.l.s4 1934713408
    %v650 = vunpack.c.0.s8 %v649
    %v651 = vperm.slane %v641, %v650
    %v653 = vunpack.c.l.s4 1934713408
    %v654 = vunpack.c.0.s8 %v653
    %v655 = vperm.slane %v647, %v654
    %v656 = vrot.slane %v645, 4
    %v657 = vsel %vm408, 0.0, %v656
    %v659 = vunpack.c.l.s4 1934713408
    %v660 = vunpack.c.0.s8 %v659
    %v661 = vperm.slane %v645, %v660
    %v663 = vunpack.c.l.s4 1934713408
    %v664 = vunpack.c.0.s8 %v663
    %v665 = vperm.slane %v657, %v664
    %v666 = vrot.slane %v651, 4
    %v667 = vsel %vm408, 0.0, %v666
    %v668 = vrot.slane %v655, 4
    %v669 = vsel %vm408, 0.0, %v668
    %v670 = vrot.slane %v661, 4
    %v671 = vsel %vm408, 0.0, %v670
    %v672 = vrot.slane %v665, 4
    %v673 = vsel %vm408, 0.0, %v672
    %v674 = vrot.slane %v406, 4
    %v675 = vsel %vm408, 0.0, %v674
    %v677 = vunpack.c.l.s4 1983009808
    %v678 = vunpack.c.0.s8 %v677
    %v679 = vperm.slane %v406, %v678
    %v681 = vunpack.c.l.s4 1983009808
    %v682 = vunpack.c.0.s8 %v681
    %v683 = vperm.slane %v675, %v682
    %v684 = vrot.slane %v679, 4
    %v685 = vsel %vm408, 0.0, %v684
    %v687 = vunpack.c.l.s4 1934713408
    %v688 = vunpack.c.0.s8 %v687
    %v689 = vperm.slane %v679, %v688
    %v691 = vunpack.c.l.s4 1934713408
    %v692 = vunpack.c.0.s8 %v691
    %v693 = vperm.slane %v685, %v692
    %v694 = vrot.slane %v683, 4
    %v695 = vsel %vm408, 0.0, %v694
    %v697 = vunpack.c.l.s4 1934713408
    %v698 = vunpack.c.0.s8 %v697
    %v699 = vperm.slane %v683, %v698
    %v701 = vunpack.c.l.s4 1934713408
    %v702 = vunpack.c.0.s8 %v701
    %v703 = vperm.slane %v695, %v702
    %v704 = vrot.slane %v689, 4
    %v705 = vsel %vm408, 0.0, %v704
    %v706 = vrot.slane %v693, 4
    %v707 = vsel %vm408, 0.0, %v706
    %v708 = vrot.slane %v699, 4
    %v709 = vsel %vm408, 0.0, %v708
    %v710 = vrot.slane %v703, 4
    %v711 = vsel %vm408, 0.0, %v710
    %720 = vrot.lane.b32.xlu0 %v439, 32
    %v721 = vpop.permute.xlu0 %720
    %722 = vrot.lane.b32.xlu0 %v477, 32
    %v723 = vpop.permute.xlu0 %722
    %724 = vrot.lane.b32.xlu0 %v515, 32
    %v725 = vpop.permute.xlu0 %724
    %726 = vrot.lane.b32.xlu0 %v553, 32
    %v727 = vpop.permute.xlu0 %726
    %728 = vrot.lane.b32.xlu0 %v591, 32
    %v729 = vpop.permute.xlu0 %728
    %730 = vrot.lane.b32.xlu0 %v629, 32
    %v731 = vpop.permute.xlu0 %730
    %732 = vrot.lane.b32.xlu0 %v667, 32
    %v733 = vpop.permute.xlu0 %732
    %734 = vrot.lane.b32.xlu0 %v705, 32
    %v735 = vpop.permute.xlu0 %734
    %752 = vrot.lane.b32.xlu0 %v427, 64
    %v753 = vpop.permute.xlu0 %752
    %754 = vrot.lane.b32.xlu0 %v465, 64
    %v755 = vpop.permute.xlu0 %754
    %756 = vrot.lane.b32.xlu0 %v503, 64
    %v757 = vpop.permute.xlu0 %756
    %758 = vrot.lane.b32.xlu0 %v541, 64
    %v759 = vpop.permute.xlu0 %758
    %760 = vrot.lane.b32.xlu0 %v579, 64
    %v761 = vpop.permute.xlu0 %760
    %762 = vrot.lane.b32.xlu0 %v617, 64
    %v763 = vpop.permute.xlu0 %762
    %764 = vrot.lane.b32.xlu0 %v655, 64
    %v765 = vpop.permute.xlu0 %764
    %766 = vrot.lane.b32.xlu0 %v693, 64
    %v767 = vpop.permute.xlu0 %766
    %784 = vrot.lane.b32.xlu0 %v441, 96
    %v785 = vpop.permute.xlu0 %784
    %786 = vrot.lane.b32.xlu0 %v479, 96
    %v787 = vpop.permute.xlu0 %786
    %788 = vrot.lane.b32.xlu0 %v517, 96
    %v789 = vpop.permute.xlu0 %788
    %790 = vrot.lane.b32.xlu0 %v555, 96
    %v791 = vpop.permute.xlu0 %790
    %792 = vrot.lane.b32.xlu0 %v593, 96
    %v793 = vpop.permute.xlu0 %792
    %794 = vrot.lane.b32.xlu0 %v631, 96
    %v795 = vpop.permute.xlu0 %794
    %796 = vrot.lane.b32.xlu0 %v669, 96
    %v797 = vpop.permute.xlu0 %796
    %798 = vrot.lane.b32.xlu0 %v707, 96
    %v799 = vpop.permute.xlu0 %798
    %816 = vrot.lane.b32.xlu0 %v443, 32
    %v817 = vpop.permute.xlu0 %816
    %818 = vrot.lane.b32.xlu0 %v481, 32
    %v819 = vpop.permute.xlu0 %818
    %820 = vrot.lane.b32.xlu0 %v519, 32
    %v821 = vpop.permute.xlu0 %820
    %822 = vrot.lane.b32.xlu0 %v557, 32
    %v823 = vpop.permute.xlu0 %822
    %824 = vrot.lane.b32.xlu0 %v595, 32
    %v825 = vpop.permute.xlu0 %824
    %826 = vrot.lane.b32.xlu0 %v633, 32
    %v827 = vpop.permute.xlu0 %826
    %828 = vrot.lane.b32.xlu0 %v671, 32
    %v829 = vpop.permute.xlu0 %828
    %830 = vrot.lane.b32.xlu0 %v709, 32
    %v831 = vpop.permute.xlu0 %830
    %848 = vrot.lane.b32.xlu0 %v437, 64
    %v849 = vpop.permute.xlu0 %848
    %850 = vrot.lane.b32.xlu0 %v475, 64
    %v851 = vpop.permute.xlu0 %850
    %852 = vrot.lane.b32.xlu0 %v513, 64
    %v853 = vpop.permute.xlu0 %852
    %854 = vrot.lane.b32.xlu0 %v551, 64
    %v855 = vpop.permute.xlu0 %854
    %856 = vrot.lane.b32.xlu0 %v589, 64
    %v857 = vpop.permute.xlu0 %856
    %858 = vrot.lane.b32.xlu0 %v627, 64
    %v859 = vpop.permute.xlu0 %858
    %860 = vrot.lane.b32.xlu0 %v665, 64
    %v861 = vpop.permute.xlu0 %860
    %862 = vrot.lane.b32.xlu0 %v703, 64
    %v863 = vpop.permute.xlu0 %862
    %880 = vrot.lane.b32.xlu0 %v445, 96
    %v881 = vpop.permute.xlu0 %880
    %882 = vrot.lane.b32.xlu0 %v483, 96
    %v883 = vpop.permute.xlu0 %882
    %884 = vrot.lane.b32.xlu0 %v521, 96
    %v885 = vpop.permute.xlu0 %884
    %886 = vrot.lane.b32.xlu0 %v559, 96
    %v887 = vpop.permute.xlu0 %886
    %888 = vrot.lane.b32.xlu0 %v597, 96
    %v889 = vpop.permute.xlu0 %888
    %890 = vrot.lane.b32.xlu0 %v635, 96
    %v891 = vpop.permute.xlu0 %890
    %892 = vrot.lane.b32.xlu0 %v673, 96
    %v893 = vpop.permute.xlu0 %892
    %894 = vrot.lane.b32.xlu0 %v711, 96
    %v895 = vpop.permute.xlu0 %894
    %v904 = vsel %vm70, %v423, %v721
    %v905 = vsel %vm70, %v461, %v723
    %v906 = vsel %vm70, %v499, %v725
    %v907 = vsel %vm70, %v537, %v727
    %v908 = vsel %vm70, %v575, %v729
    %v909 = vsel %vm70, %v613, %v731
    %v910 = vsel %vm70, %v651, %v733
    %v911 = vsel %vm70, %v689, %v735
    %vm912 = vcmask 523264
    %v913 = vsel %vm912, %v904, %v753
    %v914 = vsel %vm912, %v905, %v755
    %v915 = vsel %vm912, %v906, %v757
    %v916 = vsel %vm912, %v907, %v759
    %v917 = vsel %vm912, %v908, %v761
    %v918 = vsel %vm912, %v909, %v763
    %v919 = vsel %vm912, %v910, %v765
    %v920 = vsel %vm912, %v911, %v767
    %vm921 = vcmask 785408
    %v922 = vsel %vm921, %v913, %v785
    %v923 = vsel %vm921, %v914, %v787
    %v924 = vsel %vm921, %v915, %v789
    %v925 = vsel %vm921, %v916, %v791
    %v926 = vsel %vm921, %v917, %v793
    %v927 = vsel %vm921, %v918, %v795
    %v928 = vsel %vm921, %v919, %v797
    %v929 = vsel %vm921, %v920, %v799
    %v930 = vsel %vm70, %v433, %v817
    %v931 = vsel %vm70, %v471, %v819
    %v932 = vsel %vm70, %v509, %v821
    %v933 = vsel %vm70, %v547, %v823
    %v934 = vsel %vm70, %v585, %v825
    %v935 = vsel %vm70, %v623, %v827
    %v936 = vsel %vm70, %v661, %v829
    %v937 = vsel %vm70, %v699, %v831
    %v938 = vsel %vm912, %v930, %v849
    %v939 = vsel %vm912, %v931, %v851
    %v940 = vsel %vm912, %v932, %v853
    %v941 = vsel %vm912, %v933, %v855
    %v942 = vsel %vm912, %v934, %v857
    %v943 = vsel %vm912, %v935, %v859
    %v944 = vsel %vm912, %v936, %v861
    %v945 = vsel %vm912, %v937, %v863
    %v946 = vsel %vm921, %v938, %v881
    %v947 = vsel %vm921, %v939, %v883
    %v948 = vsel %vm921, %v940, %v885
    %v949 = vsel %vm921, %v941, %v887
    %v950 = vsel %vm921, %v942, %v889
    %v951 = vsel %vm921, %v943, %v891
    %v952 = vsel %vm921, %v944, %v893
    %v953 = vsel %vm921, %v945, %v895
    %v970 = vrot.slane %v946, 7
    %v971 = vrot.slane %v947, 7
    %v972 = vrot.slane %v948, 7
    %v973 = vrot.slane %v949, 7
    %v974 = vrot.slane %v950, 7
    %v975 = vrot.slane %v951, 7
    %v976 = vrot.slane %v952, 7
    %v977 = vrot.slane %v953, 7
    %vm978 = vcmask 1040384
    %v979 = vsel %vm978, %v922, %v970
    %v980 = vsel %vm978, %v923, %v971
    %v981 = vsel %vm978, %v924, %v972
    %v982 = vsel %vm978, %v925, %v973
    %v983 = vsel %vm978, %v926, %v974
    %v984 = vsel %vm978, %v927, %v975
    %v985 = vsel %vm978, %v928, %v976
    %v986 = vsel %vm978, %v929, %v977
    %v995 = vlaneseq
    %vm996 = vcmp.ge.s32.totalorder %v995, 0
    %vm997 = vcmp.lt.s32.totalorder %v995, 256
    %vm998 = vmand %vm996, %vm997
    %999 = vst.msk [vmem:[#allocation8] sm:$0x3] %vm998, %v979
    %1000 = vst.msk [vmem:[#allocation8 + $0x2] sm:$0x3] %vm998, %v980
    %1001 = vst.msk [vmem:[#allocation8 + $0x4] sm:$0x3] %vm998, %v981
    %1002 = vst.msk [vmem:[#allocation8 + $0x6] sm:$0x3] %vm998, %v982
    %1003 = vst.msk [vmem:[#allocation8 + $0x8] sm:$0x3] %vm998, %v983
    %1004 = vst.msk [vmem:[#allocation8 + $0xa] sm:$0x3] %vm998, %v984
    %1005 = vst.msk [vmem:[#allocation8 + $0xc] sm:$0x3] %vm998, %v985
    %1006 = vst.msk [vmem:[#allocation8 + $0xe] sm:$0x3] %vm998, %v986
    // Predicated region
    $region30: #{tpu_custom_call.1} parent=1 // pred_check
      _
    $region31: #{tpu_custom_call.1} parent=1 // pred_check_branch
      %1008 = sbr.rel (0) target = $region33
    $region32: #{tpu_custom_call.1} parent=1 // pred_region
      %1010 = vsyncadd [#allocation5], 0
      %s1011 = sshll.u32 [#allocation8], 4
      %s1012 = int_to_ptr.vmem [resolvable:$true] %s1011
      %s1013 = sshll.u32 %s5, 4
      %s1014 = int_to_ptr.hbm [resolvable:$true] %s1013
      %1019 = dma.vmem_to_hbm [thread:$0]  %s1012, 256, %s1014, [#allocation5], 32, 32, 2
    $region33: #{tpu_custom_call.1} parent=1 // pred_fallthru
      _
    // Predicated region
    $region34: #{tpu_custom_call.1} parent=1 // pred_check
      _
    $region35: #{tpu_custom_call.1} parent=1 // pred_check_branch
      %1021 = sbr.rel (0) target = $region37
    $region36: #{tpu_custom_call.1} parent=1 // pred_region
      %1023 = dma.done [#allocation5], 256
    $region37: #{tpu_custom_call.1} parent=1 // pred_fallthru
      _
    %1024 = vsyncpa [#allocation4], 1
    %1025 = vsyncpa [#allocation7], 1
    %1026 = vsyncpa [#allocation5], 1

</llo_original>
